<compile_context>
chip_gen: v7x
topology: tpu7x:2x2x1
jax: 0.10.0
libtpu: 0.0.40
codegen_flags: <defaults>
</compile_context>

<pallas_src>
import functools

import jax
import jax.numpy as jnp
from jax.experimental import pallas as pl
from jax.experimental.pallas import tpu as pltpu

_MIN_BLOCKS = 4  # >= 2 pipelined steps per core on v7x megacore, >= 4 on single-TC


def _minmax_scaler_kernel(x_ref, o_ref, *, min_val, max_val):
    x = x_ref[...]
    x = jnp.clip(x, min_val, max_val)            # VPU, input dtype (native bf16 on v6e+)
    xf = x.astype(jnp.float32)
    s = jnp.sum(xf, axis=-1, keepdims=True)      # XLU row reduce, f32 accumulate
    r = pl.reciprocal(s, approx=True)            # EUP slot (free in this mem-bound kernel)
    r = r * (2.0 - s * r)                        # one Newton step -> ~f32 accuracy
    if jnp.dtype(o_ref.dtype).itemsize < 4:
        # Keep the normalize in the narrow dtype: halves vreg/VMEM pressure,
        # enabling the larger tiles selected below (per perf review).
        o_ref[...] = (x * r.astype(x.dtype)).astype(o_ref.dtype)
    else:
        o_ref[...] = (xf * r).astype(o_ref.dtype)


def _vmem_capacity_bytes():
    try:
        return int(pltpu.get_tpu_info().vmem_capacity_bytes)
    except Exception:
        return 64 << 20  # conservative fallback (v7x per-TC physical VMEM)


def _select_row_tile(rows, feats, itemsize, sublane, tile_cap_bytes):
    """Largest sublane-aligned row tile whose f32 working copy fits the per-tile
    cap, shrunk so the grid has >= _MIN_BLOCKS steps when rows allow it."""
    row_bytes = feats * max(itemsize, 4)  # f32 working copy dominates VMEM use
    by_vmem = max(sublane, (tile_cap_bytes // max(1, row_bytes)) // sublane * sublane)
    if rows <= _MIN_BLOCKS * sublane:
        # Tiny input: a single full-extent block (allowed even if not sublane
        # aligned) or a couple of sublane blocks if VMEM is extremely tight.
        return min(rows, by_vmem)
    by_grid = max(sublane, (rows // _MIN_BLOCKS) // sublane * sublane)
    return min(by_vmem, by_grid)


def min_max_scaler(x, min_val=0.05, max_val=0.4, *, row_tile=None):
    """clamp(x, min, max) / rowsum(clamp) along the last dim. Any leading dims."""
    if min_val <= 0.0:
        # A non-positive clamp floor could give a zero row sum -> inf/nan.
        raise ValueError("min_val must be > 0 so the row sum cannot vanish")
    if min_val > max_val:
        raise ValueError("min_val must be <= max_val")

    orig_shape = x.shape
    x2 = x.reshape(-1, orig_shape[-1]) if x.ndim != 2 else x
    rows, feats = x2.shape
    itemsize = jnp.dtype(x2.dtype).itemsize
    sublane = 8 if itemsize >= 4 else (16 if itemsize == 2 else 32)

    vmem_cap = _vmem_capacity_bytes()
    # ~12 MiB tiles on 128-MiB parts (v5e/v6e), ~6.4 MiB on 64-MiB v7x.
    tile_cap = min(12 << 20, vmem_cap // 10)
    if row_tile is None:
        row_tile = _select_row_tile(rows, feats, itemsize, sublane, tile_cap)

    num_blocks = pl.cdiv(rows, row_tile)

    # VMEM budget: in + out double-buffered in input dtype, plus the f32 copy
    # that lives across the reduce -> normalize, capped below physical VMEM.
    tile_in = row_tile * feats * itemsize
    tile_f32 = row_tile * feats * 4
    vmem_limit = int(min(int(vmem_cap * 0.75),
                         max(32 << 20, 4 * tile_in + 2 * tile_f32)))

    kernel = functools.partial(
        _minmax_scaler_kernel, min_val=min_val, max_val=max_val)

    out = pl.pallas_call(
        kernel,
        out_shape=jax.ShapeDtypeStruct((rows, feats), x2.dtype),
        grid_spec=pl.GridSpec(
            grid=(num_blocks,),
            in_specs=[pl.BlockSpec((row_tile, feats), lambda i: (i, 0))],
            out_specs=pl.BlockSpec((row_tile, feats), lambda i: (i, 0)),
        ),
        compiler_params=pltpu.CompilerParams(
            dimension_semantics=("parallel",),
            vmem_limit_bytes=vmem_limit,
        ),
    )(x2)

    return out.reshape(orig_shape)


def min_max_scaler_ref(x, min_val=0.05, max_val=0.4):
    x = jnp.clip(x, min_val, max_val)
    return x / jnp.sum(x, axis=-1, keepdims=True)


if __name__ == "__main__":
    key = jax.random.PRNGKey(0)
    k1, k2, k3, k4 = jax.random.split(key, 4)

    # Case 1: small TPU-friendly shape (8 "batch" rows of 128-way allocations).
    x1 = jax.random.uniform(k1, (8, 128), dtype=jnp.float32)
    out1 = jax.block_until_ready(min_max_scaler(x1))
    ref1 = min_max_scaler_ref(x1)
    assert out1.shape == ref1.shape and out1.dtype == ref1.dtype
    assert jnp.allclose(out1, ref1, atol=1e-5, rtol=1e-5), "mismatch vs reference (case 1)"
    assert jnp.allclose(jnp.sum(out1, axis=-1), 1.0, atol=1e-5)

    # Case 2: ragged shape (10 rows, 96 features) — no pad/slice, full-extent block.
    x2 = jax.random.uniform(k2, (10, 96), dtype=jnp.float32)
    out2 = jax.block_until_ready(min_max_scaler(x2))
    ref2 = min_max_scaler_ref(x2)
    assert jnp.allclose(out2, ref2, atol=1e-5, rtol=1e-5), "mismatch vs reference (case 2)"
    assert jnp.allclose(jnp.sum(out2, axis=-1), 1.0, atol=1e-5)

    # Case 3: batched 3-D input (leading dims flattened), feats = 32, no lane padding.
    x3 = jax.random.uniform(k3, (4, 8, 32), dtype=jnp.float32)
    out3 = jax.block_until_ready(min_max_scaler(x3))
    ref3 = min_max_scaler_ref(x3)
    assert out3.shape == ref3.shape
    assert jnp.allclose(out3, ref3, atol=1e-5, rtol=1e-5), "mismatch vs reference (case 3)"
    assert jnp.allclose(jnp.sum(out3, axis=-1), 1.0, atol=1e-5)

    # Case 4: multi-block grid with a ragged edge block (200 rows not divisible
    # by the selected sublane-aligned row tile) — exercises masked edge handling.
    x4 = jax.random.uniform(k4, (200, 64), dtype=jnp.float32)
    out4 = jax.block_until_ready(min_max_scaler(x4))
    ref4 = min_max_scaler_ref(x4)
    assert jnp.allclose(out4, ref4, atol=1e-5, rtol=1e-5), "mismatch vs reference (case 4)"
    assert jnp.allclose(jnp.sum(out4, axis=-1), 1.0, atol=1e-5)

    print("KERNEL_OK")
</pallas_src>

<mosaic_0001>
module attributes {stable_mosaic.version = 11 : i64} {
  func.func @_minmax_scaler_kernel(%arg0: i32, %arg1: memref<8x128xf32, #tpu.memory_space<vmem>>, %arg2: memref<8x128xf32, #tpu.memory_space<vmem>>) attributes {dimension_semantics = [#tpu.dimension_semantics<parallel>], iteration_bounds = array<i64: 1>, scalar_prefetch = 0 : i64, scratch_operands = 0 : i64, tpu.core_type = #tpu.core_type<tc>, window_params = [{transform_indices = @transform_0, window_bounds = array<i64: 8, 128>}, {transform_indices = @transform_1, window_bounds = array<i64: 8, 128>}]} {
    %c0 = arith.constant 0 : index
    %c0_0 = arith.constant 0 : index
    %0 = vector.load %arg1[%c0, %c0_0] : memref<8x128xf32, #tpu.memory_space<vmem>>, vector<8x128xf32>
    %cst = arith.constant 5.000000e-02 : f32
    %cst_1 = arith.constant 4.000000e-01 : f32
    %1 = vector.broadcast %cst : f32 to vector<8x128xf32>
    %2 = arith.maximumf %1, %0 : vector<8x128xf32>
    %3 = vector.broadcast %cst_1 : f32 to vector<8x128xf32>
    %4 = arith.minimumf %3, %2 : vector<8x128xf32>
    %cst_2 = arith.constant dense<0.000000e+00> : vector<8xf32>
    %5 = vector.multi_reduction <add>, %4, %cst_2 [1] : vector<8x128xf32> to vector<8xf32>
    %6 = vector.shape_cast %5 : vector<8xf32> to vector<8x1xf32>
    %7 = tpu.reciprocal %6 {approx = true} : vector<8x1xf32> -> vector<8x1xf32>
    %8 = arith.mulf %6, %7 : vector<8x1xf32>
    %cst_3 = arith.constant 2.000000e+00 : f32
    %9 = vector.broadcast %cst_3 : f32 to vector<8x1xf32>
    %10 = arith.subf %9, %8 : vector<8x1xf32>
    %11 = arith.mulf %7, %10 : vector<8x1xf32>
    %12 = vector.broadcast %11 : vector<8x1xf32> to vector<8x128xf32>
    %13 = arith.mulf %4, %12 : vector<8x128xf32>
    %c0_4 = arith.constant 0 : index
    %c0_5 = arith.constant 0 : index
    %14 = vector.load %arg2[%c0_4, %c0_5] : memref<8x128xf32, #tpu.memory_space<vmem>>, vector<8x128xf32>
    tpu.vector_store %arg2[%c0_4, %c0_5], %13 {strides = array<i32>} : memref<8x128xf32, #tpu.memory_space<vmem>>, vector<8x128xf32>,
    return
  }
  func.func @transform_0(%arg0: i32) -> (i32, i32) {
    %c0_i32 = arith.constant 0 : i32
    %c0_i32_0 = arith.constant 0 : i32
    return %arg0, %c0_i32 : i32, i32
  }
  func.func @transform_1(%arg0: i32) -> (i32, i32) {
    %c0_i32 = arith.constant 0 : i32
    %c0_i32_0 = arith.constant 0 : i32
    return %arg0, %c0_i32 : i32, i32
  }
}

</mosaic_0001>

<llo_original>
// kernel: tpu_custom_call.1
$region0: #{tpu_custom_call.1}
  #allocation0 [shape = 'u32[]', space=smem, size = 0x4, offset = 0x4, fixed_abs, tag = 'smem constant byte address 0x4 - core index']
  #allocation1 [shape = 'u32[144,128]{1,0:T(1,128)}', space=vmem, size = 0x12000, scoped, tag = 'internal scratch']
  %s0 = inlined_call_operand.hbm [shape: f32[8,128], index: 0, kind: input, shape index: {}]
  %s1 = inlined_call_operand.hbm [shape: f32[8,128], index: 1, kind: output, shape index: {}]
  %s2 = sld [smem:[#allocation0]]
  $region18: #{tpu_custom_call.1} parent=0
    _
  %s4 = ssub.s32 1, %s2
  %s5 = scalar_select 0, %s4, %s2
  $region1: #{tpu_custom_call.1} parent=0
    #allocation2 [shape = 'u8[4096]{0}', space=vmem, size = 0x1000, scoped, tag = 'input window, operand 0, single buffered']
    #allocation3 [shape = 's32[1]{0}', space=sflag, size = 0x4, scoped, tag = 'scoped memory for tpu_custom_call.1']
    #allocation4 [shape = 's32[1]{0}', space=sflag, size = 0x4, scoped, tag = 'scoped memory for tpu_custom_call.1']
    #allocation5 [shape = 'u8[4096]{0}', space=vmem, size = 0x1000, scoped, tag = 'output window, operand 0, single buffered']
    %6 = vsyncpa [#allocation3], 0
    %7 = vsyncpa [#allocation4], 0
    // Predicated region
    $region2: #{tpu_custom_call.1} parent=1 // pred_check
      _
    $region3: #{tpu_custom_call.1} parent=1 // pred_check_branch
      %9 = sbr.rel (0) target = $region5
    $region4: #{tpu_custom_call.1} parent=1 // pred_region
      %s11 = ssub.s32 128, 128
      %12 = vsyncadd [#allocation3], %s11
      %s14 = sshll.u32 [#allocation2], 4
      %s15 = int_to_ptr.vmem [resolvable:$true] %s14
      %17 = dma.hbm_to_vmem [thread:$0]  %s0, 128, %s15, [#allocation3]
    $region5: #{tpu_custom_call.1} parent=1 // pred_fallthru
      _
    // Predicated region
    $region6: #{tpu_custom_call.1} parent=1 // pred_check
      _
    $region7: #{tpu_custom_call.1} parent=1 // pred_check_branch
      %19 = sbr.rel (0) target = $region9
    $region8: #{tpu_custom_call.1} parent=1 // pred_region
      %20 = dma.done [#allocation3], 128
    $region9: #{tpu_custom_call.1} parent=1 // pred_fallthru
      _
    %v21 = vld [vmem:[#allocation2] sm:$0xff]
    %v22 = vmax.f32 %v21, 0.05
    %v23 = vmin.f32 %v22, 0.4
    %24 = vadd.xlane.f32.xlu0 %v23
    %v25 = vpop.xlane.xlu0 %24
    %v26 = vrcp.pop %v25
    %v27 = vmul.f32 %v25, %v26
    %v28 = vsub.f32 2.0, %v27
    %v29 = vmul.f32 %v26, %v28
    %v30 = vmul.f32 %v23, %v29
    %31 = vst [vmem:[#allocation5] sm:$0xff] %v30
    // Predicated region
    $region10: #{tpu_custom_call.1} parent=1 // pred_check
      _
    $region11: #{tpu_custom_call.1} parent=1 // pred_check_branch
      %33 = sbr.rel (0) target = $region13
    $region12: #{tpu_custom_call.1} parent=1 // pred_region
      %s35 = ssub.s32 128, 128
      %36 = vsyncadd [#allocation4], %s35
      %s38 = sshll.u32 [#allocation5], 4
      %s39 = int_to_ptr.vmem [resolvable:$true] %s38
      %41 = dma.vmem_to_hbm [thread:$0]  %s39, 128, %s1, [#allocation4]
    $region13: #{tpu_custom_call.1} parent=1 // pred_fallthru
      _
    // Predicated region
    $region14: #{tpu_custom_call.1} parent=1 // pred_check
      _
    $region15: #{tpu_custom_call.1} parent=1 // pred_check_branch
      %43 = sbr.rel (0) target = $region17
    $region16: #{tpu_custom_call.1} parent=1 // pred_region
      %44 = dma.done [#allocation4], 128
    $region17: #{tpu_custom_call.1} parent=1 // pred_fallthru
      _
    %45 = vsyncpa [#allocation3], 1
    %46 = vsyncpa [#allocation4], 1

</llo_original>
